<compile_context>
chip_gen: v6e
topology: v6e:2x2x1
jax: 0.10.0
libtpu: 0.0.40
codegen_flags: <defaults>
</compile_context>

<pallas_src>
import functools
from typing import NamedTuple, Optional

import jax
import jax.numpy as jnp
from jax.experimental import pallas as pl
from jax.experimental.pallas import tpu as pltpu


# ----------------------------- kernels -------------------------------------

def _linear_tanh_kernel(x_ref, w_ref, b_ref, o_ref, acc_ref):
    """Eval path: o = tanh(x @ W_t + b); dropout is identity."""
    k = pl.program_id(2)

    @pl.when(k == 0)
    def _():
        acc_ref[...] = jnp.zeros_like(acc_ref)

    acc_ref[...] += jnp.dot(x_ref[...], w_ref[...],
                            preferred_element_type=jnp.float32)

    @pl.when(k == pl.num_programs(2) - 1)
    def _():
        y = jnp.tanh(acc_ref[...] + b_ref[...].astype(jnp.float32))
        o_ref[...] = y.astype(o_ref.dtype)


def _linear_tanh_dropout_kernel(x_ref, w_ref, b_ref, bits_ref, o_ref, acc_ref,
                                *, threshold, scale):
    """Train path: o = dropout(tanh(x @ W_t + b), p) with 1/(1-p) scaling."""
    k = pl.program_id(2)

    @pl.when(k == 0)
    def _():
        acc_ref[...] = jnp.zeros_like(acc_ref)

    acc_ref[...] += jnp.dot(x_ref[...], w_ref[...],
                            preferred_element_type=jnp.float32)

    @pl.when(k == pl.num_programs(2) - 1)
    def _():
        y = jnp.tanh(acc_ref[...] + b_ref[...].astype(jnp.float32))
        # keep with probability 1 - p: uint32 bits uniform in [0, 2^32)
        keep = bits_ref[...] >= jnp.uint32(threshold)
        o_ref[...] = jnp.where(keep, y * jnp.float32(scale),
                               jnp.float32(0.0)).astype(o_ref.dtype)


# ----------------------------- helpers ---------------------------------------

def _round_up(n, m):
    return ((n + m - 1) // m) * m


def _pick_tile(padded, candidates=(512, 256, 128)):
    for c in candidates:
        if padded % c == 0:
            return c
    return padded  # unreachable for multiples of 128


class TransformNetParams(NamedTuple):
    weight_t: jax.Array   # (K_pad, J_pad), compute dtype (default bf16)
    bias_row: jax.Array   # (1, J_pad), float32
    in_dim: int
    out_dim: int


def prepare_params(weight, bias, *, compute_dtype=jnp.bfloat16):
    """One-time prep: transpose torch-layout (J, D) weight, pad to 128
    multiples and cast to the MXU compute dtype (bf16 by default)."""
    J, D = weight.shape
    K_pad = _round_up(D, 128)
    J_pad = _round_up(J, 128)
    w_t = jnp.zeros((K_pad, J_pad), compute_dtype)
    w_t = w_t.at[:D, :J].set(weight.T.astype(compute_dtype))
    b_row = jnp.zeros((1, J_pad), jnp.float32)
    b_row = b_row.at[0, :J].set(bias.astype(jnp.float32))
    return TransformNetParams(w_t, b_row, D, J)


# ----------------------------- wrapper --------------------------------------

def transform_net_forward(params: TransformNetParams, vector,
                          vector2: Optional[jax.Array] = None, *,
                          training: bool = False, dropout_p: float = 0.2,
                          rng_key: Optional[jax.Array] = None):
    """Forward pass of TransformNet.

    vector:  (B, D1) float32
    vector2: optional (B, D2) float32, concatenated along features
    returns: (B, out_dim) float32
    """
    w_t, b_row, d_in, d_out = params
    K_pad, J_pad = w_t.shape
    B = vector.shape[0]
    d1 = vector.shape[1]
    d2 = 0 if vector2 is None else vector2.shape[1]
    assert d1 + d2 == d_in, f"input dims {d1}+{d2} != weight in-dim {d_in}"

    # Stage the (optionally two-part) activation straight into one zero-padded
    # (B_pad, K_pad) compute-dtype buffer -- no separate HBM concat round-trip.
    TB = min(256, _round_up(B, 8))
    B_pad = _round_up(B, TB)
    x_pad = jnp.zeros((B_pad, K_pad), w_t.dtype)
    x_pad = x_pad.at[:B, :d1].set(vector.astype(w_t.dtype))
    if vector2 is not None:
        x_pad = x_pad.at[:B, d1:d1 + d2].set(vector2.astype(w_t.dtype))

    TJ = _pick_tile(J_pad)
    TK = _pick_tile(K_pad)
    grid = (B_pad // TB, J_pad // TJ, K_pad // TK)

    x_spec = pl.BlockSpec((TB, TK), lambda i, j, k: (i, k))
    w_spec = pl.BlockSpec((TK, TJ), lambda i, j, k: (k, j))
    b_spec = pl.BlockSpec((1, TJ), lambda i, j, k: (0, j))
    o_spec = pl.BlockSpec((TB, TJ), lambda i, j, k: (i, j))
    out_shape = jax.ShapeDtypeStruct((B_pad, J_pad), jnp.float32)
    scratch = [pltpu.VMEM((TB, TJ), jnp.float32)]
    cparams = pltpu.CompilerParams(
        dimension_semantics=("parallel", "parallel", "arbitrary"))

    if (not training) or dropout_p == 0.0:
        out_pad = pl.pallas_call(
            _linear_tanh_kernel,
            grid=grid,
            in_specs=[x_spec, w_spec, b_spec],
            out_specs=o_spec,
            out_shape=out_shape,
            scratch_shapes=scratch,
            compiler_params=cparams,
        )(x_pad, w_t, b_row)
    else:
        assert 0.0 < dropout_p < 1.0
        if rng_key is None:
            rng_key = jax.random.PRNGKey(0)
        # TODO(synk): on real TPUs the keep-mask could be generated in-kernel
        # via pltpu.prng_seed (salted with program_id) + pltpu.prng_random_bits
        # to avoid streaming (B, J) random words from HBM; host-side
        # jax.random bits are used so the kernel also runs under interpret.
        bits = jax.random.bits(rng_key, (B_pad, J_pad), dtype=jnp.uint32)
        threshold = min(int(round(dropout_p * (2 ** 32))), 2 ** 32 - 1)
        scale = 1.0 / (1.0 - dropout_p)
        kernel = functools.partial(_linear_tanh_dropout_kernel,
                                   threshold=threshold, scale=scale)
        bits_spec = pl.BlockSpec((TB, TJ), lambda i, j, k: (i, j))
        out_pad = pl.pallas_call(
            kernel,
            grid=grid,
            in_specs=[x_spec, w_spec, b_spec, bits_spec],
            out_specs=o_spec,
            out_shape=out_shape,
            scratch_shapes=scratch,
            compiler_params=cparams,
        )(x_pad, w_t, b_row, bits)

    return out_pad[:B, :d_out]


# ----------------------------- params ---------------------------------------

def init_transform_net_params(key, input_dim, joint_space_dim):
    """Xavier-uniform weight (torch layout (J, D)), zero bias."""
    bound = (6.0 / (input_dim + joint_space_dim)) ** 0.5
    weight = jax.random.uniform(
        key, (joint_space_dim, input_dim), dtype=jnp.float32,
        minval=-bound, maxval=bound)
    bias = jnp.zeros((joint_space_dim,), dtype=jnp.float32)
    return weight, bias


# ----------------------------- demo / check ----------------------------------

if __name__ == "__main__":
    key = jax.random.PRNGKey(0)
    k_w, k_x1, k_x2, k_drop = jax.random.split(key, 4)

    batch = 4
    d1, d2 = 16, 16                 # two input halves, concatenated -> 32
    input_dim = d1 + d2
    joint_space_dim = 256           # small stand-in for the 2048 default

    weight, bias = init_transform_net_params(k_w, input_dim, joint_space_dim)
    params = prepare_params(weight, bias)   # pre-transposed, padded, bf16

    vector = jax.random.normal(k_x1, (batch, d1), dtype=jnp.float32)
    vector2 = jax.random.normal(k_x2, (batch, d2), dtype=jnp.float32)

    # Eval-mode forward (dropout = identity), the default inference path.
    out = transform_net_forward(params, vector, vector2, training=False)
    out = jax.block_until_ready(out)
    assert out.shape == (batch, joint_space_dim)

    # Reference using the same bf16 weights the kernel consumes.
    x_cat = jnp.concatenate([vector, vector2], axis=1)
    ref = jnp.tanh(
        jnp.dot(x_cat.astype(params.weight_t.dtype),
                params.weight_t[:input_dim, :joint_space_dim],
                preferred_element_type=jnp.float32)
        + bias)
    assert jnp.allclose(out, ref, atol=2e-3, rtol=2e-3)

    # Training-mode forward exercises the dropout path.
    p = 0.2
    out_tr = transform_net_forward(params, vector, vector2, training=True,
                                   dropout_p=p, rng_key=k_drop)
    out_tr = jax.block_until_ready(out_tr)
    assert out_tr.shape == (batch, joint_space_dim)

    # Every element is either exactly dropped (0) or the tanh output scaled
    # by 1/(1-p); drop fraction should be roughly p.
    scale = 1.0 / (1.0 - p)
    scaled_ref = ref * scale
    ok = (out_tr == 0.0) | (
        jnp.abs(out_tr - scaled_ref) <= 2e-3 + 2e-3 * jnp.abs(scaled_ref))
    assert bool(jnp.all(ok))
    drop_frac = float(jnp.mean(out_tr == 0.0))
    assert 0.05 < drop_frac < 0.45, f"unexpected drop fraction {drop_frac}"

    print("KERNEL_OK")
</pallas_src>

<mosaic_0001>
module attributes {stable_mosaic.version = 11 : i64} {
  func.func @_linear_tanh_kernel(%arg0: i32, %arg1: i32, %arg2: i32, %arg3: memref<8x128xbf16, #tpu.memory_space<vmem>>, %arg4: memref<128x256xbf16, #tpu.memory_space<vmem>>, %arg5: memref<1x256xf32, #tpu.memory_space<vmem>>, %arg6: memref<8x256xf32, #tpu.memory_space<vmem>>, %arg7: memref<8x256xf32, #tpu.memory_space<vmem>>) attributes {dimension_semantics = [#tpu.dimension_semantics<parallel>, #tpu.dimension_semantics<parallel>, #tpu.dimension_semantics<arbitrary>], iteration_bounds = array<i64: 1, 1, 1>, scalar_prefetch = 0 : i64, scratch_operands = 1 : i64, tpu.core_type = #tpu.core_type<tc>, window_params = [{transform_indices = @transform_0, window_bounds = array<i64: 8, 128>}, {transform_indices = @transform_1, window_bounds = array<i64: 128, 256>}, {transform_indices = @transform_2, window_bounds = array<i64: 1, 256>}, {transform_indices = @transform_3, window_bounds = array<i64: 8, 256>}]} {
    %c0_i32 = arith.constant 0 : i32
    %0 = arith.cmpi eq, %arg2, %c0_i32 : i32
    %1 = arith.extui %0 : i1 to i32
    %c0_i32_0 = arith.constant 0 : i32
    %2 = arith.cmpi ne, %1, %c0_i32_0 : i32
    scf.if %2 {
      %cst_10 = arith.constant 0.000000e+00 : f32
      %12 = vector.broadcast %cst_10 : f32 to vector<8x256xf32>
      %c0_11 = arith.constant 0 : index
      %c0_12 = arith.constant 0 : index
      %13 = vector.load %arg7[%c0_11, %c0_12] : memref<8x256xf32, #tpu.memory_space<vmem>>, vector<8x256xf32>
      tpu.vector_store %arg7[%c0_11, %c0_12], %12 {strides = array<i32>} : memref<8x256xf32, #tpu.memory_space<vmem>>, vector<8x256xf32>,
    } else {
    }
    %c0 = arith.constant 0 : index
    %c0_1 = arith.constant 0 : index
    %3 = vector.load %arg7[%c0, %c0_1] : memref<8x256xf32, #tpu.memory_space<vmem>>, vector<8x256xf32>
    %c0_2 = arith.constant 0 : index
    %c0_3 = arith.constant 0 : index
    %4 = vector.load %arg3[%c0_2, %c0_3] : memref<8x128xbf16, #tpu.memory_space<vmem>>, vector<8x128xbf16>
    %c0_4 = arith.constant 0 : index
    %c0_5 = arith.constant 0 : index
    %5 = vector.load %arg4[%c0_4, %c0_5] : memref<128x256xbf16, #tpu.memory_space<vmem>>, vector<128x256xbf16>
    %cst = arith.constant dense<0.000000e+00> : vector<8x256xf32>
    %6 = tpu.matmul %4, %5, %cst {dimension_numbers = #tpu.dot_dimension_numbers<[1], [0], [0], [1], [0, 0, 1, 1], [], []>} : vector<8x128xbf16>, vector<128x256xbf16>, vector<8x256xf32> -> vector<8x256xf32>
    %7 = arith.addf %3, %6 : vector<8x256xf32>
    %c0_6 = arith.constant 0 : index
    %c0_7 = arith.constant 0 : index
    %8 = vector.load %arg7[%c0_6, %c0_7] : memref<8x256xf32, #tpu.memory_space<vmem>>, vector<8x256xf32>
    tpu.vector_store %arg7[%c0_6, %c0_7], %7 {strides = array<i32>} : memref<8x256xf32, #tpu.memory_space<vmem>>, vector<8x256xf32>,
    %c0_i32_8 = arith.constant 0 : i32
    %9 = arith.cmpi eq, %arg2, %c0_i32_8 : i32
    %10 = arith.extui %9 : i1 to i32
    %c0_i32_9 = arith.constant 0 : i32
    %11 = arith.cmpi ne, %10, %c0_i32_9 : i32
    scf.if %11 {
      %c0_10 = arith.constant 0 : index
      %c0_11 = arith.constant 0 : index
      %12 = vector.load %arg7[%c0_10, %c0_11] : memref<8x256xf32, #tpu.memory_space<vmem>>, vector<8x256xf32>
      %c0_12 = arith.constant 0 : index
      %c0_13 = arith.constant 0 : index
      %13 = vector.load %arg5[%c0_12, %c0_13] : memref<1x256xf32, #tpu.memory_space<vmem>>, vector<1x256xf32>
      %14 = vector.broadcast %13 : vector<1x256xf32> to vector<8x256xf32>
      %15 = arith.addf %12, %14 : vector<8x256xf32>
      %16 = math.tanh %15 : vector<8x256xf32>
      %c0_14 = arith.constant 0 : index
      %c0_15 = arith.constant 0 : index
      %17 = vector.load %arg6[%c0_14, %c0_15] : memref<8x256xf32, #tpu.memory_space<vmem>>, vector<8x256xf32>
      tpu.vector_store %arg6[%c0_14, %c0_15], %16 {strides = array<i32>} : memref<8x256xf32, #tpu.memory_space<vmem>>, vector<8x256xf32>,
    } else {
    }
    return
  }
  func.func @transform_0(%arg0: i32, %arg1: i32, %arg2: i32) -> (i32, i32) {
    %c0_i32 = arith.constant 0 : i32
    return %arg0, %arg2 : i32, i32
  }
  func.func @transform_1(%arg0: i32, %arg1: i32, %arg2: i32) -> (i32, i32) {
    %c0_i32 = arith.constant 0 : i32
    return %arg2, %arg1 : i32, i32
  }
  func.func @transform_2(%arg0: i32, %arg1: i32, %arg2: i32) -> (i32, i32) {
    %c0_i32 = arith.constant 0 : i32
    %c0_i32_0 = arith.constant 0 : i32
    return %c0_i32, %arg1 : i32, i32
  }
  func.func @transform_3(%arg0: i32, %arg1: i32, %arg2: i32) -> (i32, i32) {
    %c0_i32 = arith.constant 0 : i32
    return %arg0, %arg1 : i32, i32
  }
}

</mosaic_0001>

<llo_original>
// kernel: tpu_custom_call.1
$region0: #{tpu_custom_call.1}
  #allocation0 [shape = 'u32[]', space=smem, size = 0x4, offset = 0x4, fixed_abs, tag = 'smem constant byte address 0x4 - core index']
  #allocation1 [shape = 'u32[144,128]{1,0:T(1,128)}', space=vmem, size = 0x12000, scoped, tag = 'internal scratch']
  #allocation2 [shape = 'f32[8,256]{1,0:T(8,128)}', space=vmem, size = 0x2000, scoped, tag = 'scratch operand']
  %s0 = inlined_call_operand.hbm [shape: bf16[8,128], index: 0, kind: input, shape index: {}]
  %s1 = inlined_call_operand.hbm [shape: bf16[128,256], index: 1, kind: input, shape index: {}]
  %s2 = inlined_call_operand.vmem [shape: f32[1,256], index: 2, kind: input, shape index: {}]
  %s3 = inlined_call_operand.hbm [shape: f32[8,256], index: 3, kind: output, shape index: {}]
  %s4 = sld [smem:[#allocation0]]
  $region38: #{tpu_custom_call.1} parent=0
    _
  %s6 = ssub.s32 1, %s4
  %s7 = scalar_select 0, %s6, %s4
  $region1: #{tpu_custom_call.1} parent=0
    #allocation3 [shape = 'u8[2048]{0}', space=vmem, size = 0x800, scoped, tag = 'input window, operand 0, single buffered']
    #allocation4 [shape = 's32[1]{0}', space=sflag, size = 0x4, scoped, tag = 'scoped memory for tpu_custom_call.1']
    #allocation5 [shape = 's32[1]{0}', space=sflag, size = 0x4, scoped, tag = 'scoped memory for tpu_custom_call.1']
    #allocation6 [shape = 'u8[65536]{0}', space=vmem, size = 0x10000, scoped, tag = 'input window, operand 1, single buffered']
    #allocation7 [shape = 's32[1]{0}', space=sflag, size = 0x4, scoped, tag = 'scoped memory for tpu_custom_call.1']
    #allocation8 [shape = 'u8[8192]{0}', space=vmem, size = 0x2000, scoped, tag = 'output window, operand 0, single buffered']
    %8 = vsyncpa [#allocation4], 0
    %9 = vsyncpa [#allocation7], 0
    %10 = vsyncpa [#allocation5], 0
    // Predicated region
    $region2: #{tpu_custom_call.1} parent=1 // pred_check
      _
    $region3: #{tpu_custom_call.1} parent=1 // pred_check_branch
      %12 = sbr.rel (0) target = $region5
    $region4: #{tpu_custom_call.1} parent=1 // pred_region
      %s14 = ssub.s32 64, 64
      %15 = vsyncadd [#allocation4], %s14
      %s17 = sshll.u32 [#allocation3], 4
      %s18 = int_to_ptr.vmem [resolvable:$true] %s17
      %20 = dma.hbm_to_vmem [thread:$0]  %s0, 64, %s18, [#allocation4]
    $region5: #{tpu_custom_call.1} parent=1 // pred_fallthru
      _
    // Predicated region
    $region6: #{tpu_custom_call.1} parent=1 // pred_check
      _
    $region7: #{tpu_custom_call.1} parent=1 // pred_check_branch
      %22 = sbr.rel (0) target = $region9
    $region8: #{tpu_custom_call.1} parent=1 // pred_region
      %s24 = ssub.s32 2048, 2048
      %25 = vsyncadd [#allocation7], %s24
      %s26 = sshll.u32 [#allocation6], 4
      %s27 = int_to_ptr.vmem [resolvable:$true] %s26
      %32 = dma.hbm_to_vmem [thread:$0]  %s1, 2048, %s27, [#allocation7], 128, 128, 8
    $region9: #{tpu_custom_call.1} parent=1 // pred_fallthru
      _
    // Predicated region
    $region10: #{tpu_custom_call.1} parent=1 // pred_check
      _
    $region11: #{tpu_custom_call.1} parent=1 // pred_check_branch
      %34 = sbr.rel (0) target = $region13
    $region12: #{tpu_custom_call.1} parent=1 // pred_region
      _
    $region13: #{tpu_custom_call.1} parent=1 // pred_fallthru
      _
    // Predicated region
    $region14: #{tpu_custom_call.1} parent=1 // pred_check
      _
    $region15: #{tpu_custom_call.1} parent=1 // pred_check_branch
      %36 = sbr.rel (0) target = $region17
    $region16: #{tpu_custom_call.1} parent=1 // pred_region
      %37 = dma.done [#allocation4], 64
    $region17: #{tpu_custom_call.1} parent=1 // pred_fallthru
      _
    // Predicated region
    $region18: #{tpu_custom_call.1} parent=1 // pred_check
      _
    $region19: #{tpu_custom_call.1} parent=1 // pred_check_branch
      %39 = sbr.rel (0) target = $region21
    $region20: #{tpu_custom_call.1} parent=1 // pred_region
      %40 = dma.done [#allocation7], 2048
    $region21: #{tpu_custom_call.1} parent=1 // pred_fallthru
      _
    %p42 = scmp.eq.s32.totalorder 0, 0
    // Predicated region
    $region22: #{tpu_custom_call.1} parent=1 // pred_check
      %p43 = pneg %p42
    $region23: #{tpu_custom_call.1} parent=1 // pred_check_branch
      %45 = sbr.rel (%p43) target = $region25
    $region24: #{tpu_custom_call.1} parent=1 // pred_region
      %46 = vst [vmem:[#allocation2] sm:$0xff] 0.0
      %47 = vst [vmem:[#allocation2 + $0x8] sm:$0xff] 0.0
    $region25: #{tpu_custom_call.1} parent=1 // pred_fallthru
      _
    %v48 = vld [vmem:[#allocation2] sm:$0xff]
    %v49 = vld [vmem:[#allocation2 + $0x8] sm:$0xff]
    %v50 = vld [vmem:[#allocation3] sm:$0xf]
    %v51 = vld [vmem:[#allocation6] sm:$0xff]
    %v52 = vld [vmem:[#allocation6 + $0x8] sm:$0xff]
    %v53 = vld [vmem:[#allocation6 + $0x10] sm:$0xff]
    %v54 = vld [vmem:[#allocation6 + $0x18] sm:$0xff]
    %v55 = vld [vmem:[#allocation6 + $0x20] sm:$0xff]
    %v56 = vld [vmem:[#allocation6 + $0x28] sm:$0xff]
    %v57 = vld [vmem:[#allocation6 + $0x30] sm:$0xff]
    %v58 = vld [vmem:[#allocation6 + $0x38] sm:$0xff]
    %v59 = vld [vmem:[#allocation6 + $0x40] sm:$0xff]
    %v60 = vld [vmem:[#allocation6 + $0x48] sm:$0xff]
    %v61 = vld [vmem:[#allocation6 + $0x50] sm:$0xff]
    %v62 = vld [vmem:[#allocation6 + $0x58] sm:$0xff]
    %v63 = vld [vmem:[#allocation6 + $0x60] sm:$0xff]
    %v64 = vld [vmem:[#allocation6 + $0x68] sm:$0xff]
    %v65 = vld [vmem:[#allocation6 + $0x70] sm:$0xff]
    %v66 = vld [vmem:[#allocation6 + $0x78] sm:$0xff]
    %v83 = vunpack.c.l.b16 %v51
    %v84 = vunpack.c.h.b16 %v51
    %v85 = vunpack.c.l.b16 %v52
    %v86 = vunpack.c.h.b16 %v52
    %v87 = vunpack.c.l.b16 %v53
    %v88 = vunpack.c.h.b16 %v53
    %v89 = vunpack.c.l.b16 %v54
    %v90 = vunpack.c.h.b16 %v54
    %v91 = vunpack.c.l.b16 %v55
    %v92 = vunpack.c.h.b16 %v55
    %v93 = vunpack.c.l.b16 %v56
    %v94 = vunpack.c.h.b16 %v56
    %v95 = vunpack.c.l.b16 %v57
    %v96 = vunpack.c.h.b16 %v57
    %v97 = vunpack.c.l.b16 %v58
    %v98 = vunpack.c.h.b16 %v58
    %v99 = vunpack.c.l.b16 %v59
    %v100 = vunpack.c.h.b16 %v59
    %v101 = vunpack.c.l.b16 %v60
    %v102 = vunpack.c.h.b16 %v60
    %v103 = vunpack.c.l.b16 %v61
    %v104 = vunpack.c.h.b16 %v61
    %v105 = vunpack.c.l.b16 %v62
    %v106 = vunpack.c.h.b16 %v62
    %v107 = vunpack.c.l.b16 %v63
    %v108 = vunpack.c.h.b16 %v63
    %v109 = vunpack.c.l.b16 %v64
    %v110 = vunpack.c.h.b16 %v64
    %v111 = vunpack.c.l.b16 %v65
    %v112 = vunpack.c.h.b16 %v65
    %v113 = vunpack.c.l.b16 %v66
    %v114 = vunpack.c.h.b16 %v66
    %v115 = vpack.c.b16 %v85, %v83
    %v116 = vpack.c.b16 %v86, %v84
    %v117 = vpack.c.b16 %v89, %v87
    %v118 = vpack.c.b16 %v90, %v88
    %v119 = vpack.c.b16 %v93, %v91
    %v120 = vpack.c.b16 %v94, %v92
    %v121 = vpack.c.b16 %v97, %v95
    %v122 = vpack.c.b16 %v98, %v96
    %v123 = vpack.c.b16 %v101, %v99
    %v124 = vpack.c.b16 %v102, %v100
    %v125 = vpack.c.b16 %v105, %v103
    %v126 = vpack.c.b16 %v106, %v104
    %v127 = vpack.c.b16 %v109, %v107
    %v128 = vpack.c.b16 %v110, %v108
    %v129 = vpack.c.b16 %v113, %v111
    %v130 = vpack.c.b16 %v114, %v112
    %147 = vmatprep.subr.bf16.mxu0 %v130
    %148 = vmatpush1.bf16.msra.mxu0 %v129
    %149 = vmatprep.subr.bf16.mxu0 %v128
    %150 = vmatpush1.bf16.msra.mxu0 %v127
    %151 = vmatprep.subr.bf16.mxu0 %v126
    %152 = vmatpush1.bf16.msra.mxu0 %v125
    %153 = vmatprep.subr.bf16.mxu0 %v124
    %154 = vmatpush1.bf16.msra.mxu0 %v123
    %155 = vmatprep.subr.bf16.mxu0 %v122
    %156 = vmatpush1.bf16.msra.mxu0 %v121
    %157 = vmatprep.subr.bf16.mxu0 %v120
    %158 = vmatpush1.bf16.msra.mxu0 %v119
    %159 = vmatprep.subr.bf16.mxu0 %v118
    %160 = vmatpush1.bf16.msra.mxu0 %v117
    %161 = vmatprep.subr.bf16.mxu0 %v116
    %162 = vmatpush1.bf16.msra.mxu0 %v115
    %163 = vmatprep.subr.bf16.mxu0 0
    %164 = vmatpush2.bf16.msra.mxu0 0
    %165 = vmatprep.subr.bf16.mxu0 0
    %166 = vmatpush2.bf16.msra.mxu0 0
    %167 = vmatprep.subr.bf16.mxu0 0
    %168 = vmatpush2.bf16.msra.mxu0 0
    %169 = vmatprep.subr.bf16.mxu0 0
    %170 = vmatpush2.bf16.msra.mxu0 0
    %171 = vmatprep.subr.bf16.mxu0 0
    %172 = vmatpush2.bf16.msra.mxu0 0
    %173 = vmatprep.subr.bf16.mxu0 0
    %174 = vmatpush2.bf16.msra.mxu0 0
    %175 = vmatprep.subr.bf16.mxu0 0
    %176 = vmatpush2.bf16.msra.mxu0 0
    %177 = vmatprep.subr.bf16.mxu0 0
    %178 = vmatpush2.bf16.msra.mxu0 0
    %179 = vmatprep.mubr.bf16.mxu0 0
    %180 = vmatmul.mubr.bf16.gmra.mxu0 %v50
    %v181 = vpop.f32.mrf.mxu0
    %v182 = vadd.f32 0.0, %v181
    %v183 = vpop.f32.mrf.mxu0
    %v184 = vadd.f32 0.0, %v183
    %v185 = vpop.f32.mrf.mxu0
    %v186 = vpop.f32.mrf.mxu0
    %187 = vdwg.mxu0
    %v188 = vadd.f32 %v48, %v182
    %v189 = vadd.f32 %v49, %v184
    %190 = vst [vmem:[#allocation2] sm:$0xff] %v188
    %191 = vst [vmem:[#allocation2 + $0x8] sm:$0xff] %v189
    // Predicated region
    $region26: #{tpu_custom_call.1} parent=1 // pred_check
      %p192 = pneg %p42
    $region27: #{tpu_custom_call.1} parent=1 // pred_check_branch
      %194 = sbr.rel (%p192) target = $region29
    $region28: #{tpu_custom_call.1} parent=1 // pred_region
      %v195 = vld [vmem:[#allocation2] sm:$0xff]
      %v196 = vld [vmem:[#allocation2 + $0x8] sm:$0xff]
      %v197 = vld [vmem:[%s2] sm:$0x3]
      %v199 = vlaneseq
      %v200 = vshrl.u32 %v199, 7
      %v201 = vsub.s32 0, %v200
      %v202 = vrot.slane %v197, %v201
      %v203 = vlaneseq
      %v204 = vshrl.u32 %v203, 7
      %v205 = vsub.s32 1, %v204
      %v206 = vrot.slane %v197, %v205
      %v209 = vadd.f32 %v195, %v202
      %v210 = vadd.f32 %v196, %v206
      %v211 = vtanh.pop %v209
      %v212 = vtanh.pop %v210
      %213 = vst [vmem:[#allocation8] sm:$0xff] %v211
      %214 = vst [vmem:[#allocation8 + $0x8] sm:$0xff] %v212
    $region29: #{tpu_custom_call.1} parent=1 // pred_fallthru
      _
    // Predicated region
    $region30: #{tpu_custom_call.1} parent=1 // pred_check
      _
    $region31: #{tpu_custom_call.1} parent=1 // pred_check_branch
      %216 = sbr.rel (0) target = $region33
    $region32: #{tpu_custom_call.1} parent=1 // pred_region
      %s218 = ssub.s32 256, 256
      %219 = vsyncadd [#allocation5], %s218
      %s221 = sshll.u32 [#allocation8], 4
      %s222 = int_to_ptr.vmem [resolvable:$true] %s221
      %224 = dma.vmem_to_hbm [thread:$0]  %s222, 256, %s3, [#allocation5]
    $region33: #{tpu_custom_call.1} parent=1 // pred_fallthru
      _
    // Predicated region
    $region34: #{tpu_custom_call.1} parent=1 // pred_check
      _
    $region35: #{tpu_custom_call.1} parent=1 // pred_check_branch
      %226 = sbr.rel (0) target = $region37
    $region36: #{tpu_custom_call.1} parent=1 // pred_region
      %227 = dma.done [#allocation5], 256
    $region37: #{tpu_custom_call.1} parent=1 // pred_fallthru
      _
    %228 = vsyncpa [#allocation4], 1
    %229 = vsyncpa [#allocation7], 1
    %230 = vsyncpa [#allocation5], 1

</llo_original>
